<compile_context>
chip_gen: v6e
topology: v6e:2x2x1
jax: 0.10.0
libtpu: 0.0.40
codegen_flags: <defaults>
</compile_context>

<pallas_src>
import math

import jax
import jax.numpy as jnp
from jax import lax
from jax.experimental import pallas as pl
from jax.experimental.pallas import tpu as pltpu


_TILE_BYTES = 4 * 1024 * 1024      # per output buffer (double-buffered by Pallas)
_VMEM_LIMIT = 32 * 1024 * 1024     # raised scoped VMEM limit; safe on v5e/v6e/v7x


def _pe_kernel(freq_ref, bias_ref, o_ref):
    # o_ref block: (tt, L) slab tile. angle[r, j] = slab_row(r) * freq[j] + bias[j]
    tt = o_ref.shape[0]
    row = (lax.broadcasted_iota(jnp.int32, (tt, 1), 0)
           + pl.program_id(0) * tt).astype(jnp.float32)           # (tt, 1) slab rows
    angle = row * freq_ref[...] + bias_ref[...]                   # broadcast -> (tt, L)
    o_ref[...] = jnp.sin(angle).astype(o_ref.dtype)               # cos == sin(x + pi/2)


def _cdiv(a: int, b: int) -> int:
    return -(-a // b)


def _round_up(a: int, m: int) -> int:
    return _cdiv(a, m) * m


def positional_encoding(max_time_dim: int, encoding_dim: int, *, dtype=jnp.float32):
    """Returns the (max_time_dim, encoding_dim) positional-encoding matrix."""
    T, D = int(max_time_dim), int(encoding_dim)
    itemsize = jnp.dtype(dtype).itemsize
    sub = max(8, 32 // itemsize)          # sublane multiple: 8 f32, 16 bf16, 32 int8

    # ---- Lane fold: fold k consecutive time rows into the lane axis so the
    # stored lane width L = k*D is a multiple of 128 (lane-dense, unmasked vst).
    if D % 128 == 0:
        k = 1
    else:
        k = 128 // math.gcd(D, 128)
        # Fall back if folding would waste more rows than exist or would make
        # a single sublane-group of folded rows exceed the tile byte budget.
        if k > T or k * D * itemsize * sub > _TILE_BYTES:
            k = 1
    L = k * D
    R = _cdiv(T, k)                       # slab rows needed to cover T positions

    # ---- Row tile: capped by bytes (not rows), multiple of the sublane count.
    rows_cap = max(sub, (_TILE_BYTES // (L * itemsize)) // sub * sub)
    if R <= sub:
        tt = R                            # single block equal to full row extent
    else:
        tt = min(rows_cap, (R // sub) * sub)
        # Guarantee >= 2 grid steps so ("parallel",) can shard rows across the
        # two v7x TensorCores (and overlap DMA/compute on single-TC chips).
        if _cdiv(R, tt) < 2:
            tt = max(sub, min(tt, _round_up(_cdiv(R, 2), sub)))
    grid = (_cdiv(R, tt),)

    # ---- Hoisted per-lane constants (computed once, outside the grid loop):
    #   global pos(r, j) = r*k + fold(j),   pair = (j mod D) // 2
    #   inv_freq = 10000^(-2*pair/D),       phase = pi/2 on odd encoding dims
    #   angle = r*(k*inv_freq) + (fold*inv_freq + phase)
    d_idx = jnp.arange(D)
    pair = (d_idx // 2).astype(jnp.float32)
    inv_freq = jnp.exp(-(2.0 * pair / jnp.float32(D)) * jnp.log(jnp.float32(10000.0)))
    phase = jnp.where(d_idx % 2 == 1, jnp.float32(jnp.pi / 2), jnp.float32(0.0))
    fold = jnp.repeat(jnp.arange(k, dtype=jnp.float32), D)            # (L,)
    inv_freq_t = jnp.tile(inv_freq, k)                                 # (L,)
    phase_t = jnp.tile(phase, k)                                       # (L,)
    freq_row = (jnp.float32(k) * inv_freq_t)[None, :]                  # (1, L)
    bias_row = (fold * inv_freq_t + phase_t)[None, :]                  # (1, L)

    slab = pl.pallas_call(
        _pe_kernel,
        out_shape=jax.ShapeDtypeStruct((R, L), dtype),   # exact rows: no padded slab
        grid_spec=pltpu.PrefetchScalarGridSpec(
            num_scalar_prefetch=0,
            grid=grid,
            # Tiny grid-invariant rows: whole-array resident in VMEM (untiled).
            in_specs=[pl.BlockSpec(memory_space=pltpu.MemorySpace.VMEM),
                      pl.BlockSpec(memory_space=pltpu.MemorySpace.VMEM)],
            # Partial last block (R % tt != 0) is clipped by Pallas on writeback.
            out_specs=pl.BlockSpec((tt, L), lambda i: (i, 0)),
        ),
        compiler_params=pltpu.CompilerParams(
            dimension_semantics=("parallel",),
            vmem_limit_bytes=_VMEM_LIMIT,
        ),
    )(freq_row, bias_row)

    if k == 1:
        return slab                                   # already (T, D), zero post-ops
    out = slab.reshape(R * k, D)                      # row-major reshape: free
    if R * k != T:
        out = out[:T]                                 # only when T % k != 0 (< k rows)
    return out


def positional_encoding_ref(max_time_dim: int, encoding_dim: int):
    """Pure-JAX reference for validation."""
    pos = jnp.arange(max_time_dim, dtype=jnp.float32)[:, None]
    dim = jnp.arange(encoding_dim)[None, :]
    pair = (dim // 2).astype(jnp.float32)
    inv_freq = jnp.exp(-(2.0 * pair / encoding_dim) * jnp.log(10000.0))
    angle = pos * inv_freq
    return jnp.where(dim % 2 == 0, jnp.sin(angle), jnp.cos(angle)).astype(jnp.float32)


if __name__ == "__main__":
    # Module takes no tensor inputs; key kept only for deterministic-setup convention.
    _ = jax.random.PRNGKey(0)

    # Main small shape (D < 128 -> lane fold k=4; tiny full-extent row block).
    pe = jax.block_until_ready(positional_encoding(16, 32))
    ref = positional_encoding_ref(16, 32)
    assert pe.shape == (16, 32) and pe.dtype == jnp.float32
    assert jnp.allclose(pe, ref, atol=2e-5, rtol=2e-5)

    # Multi-step grid with a clipped partial last output block (R=150, tt=144).
    pe2 = jax.block_until_ready(positional_encoding(300, 64))
    assert pe2.shape == (300, 64)
    assert jnp.allclose(pe2, positional_encoding_ref(300, 64), atol=2e-5, rtol=2e-5)

    # k == 1 path (D multiple of 128) with the >=2-grid-step clamp (tt=24, grid=2).
    pe3 = jax.block_until_ready(positional_encoding(40, 128))
    assert pe3.shape == (40, 128)
    assert jnp.allclose(pe3, positional_encoding_ref(40, 128), atol=2e-5, rtol=2e-5)

    # T not a multiple of the fold factor (exercises the small final row slice).
    pe4 = jax.block_until_ready(positional_encoding(13, 32))
    assert pe4.shape == (13, 32)
    assert jnp.allclose(pe4, positional_encoding_ref(13, 32), atol=2e-5, rtol=2e-5)

    # bf16 output path: f32 compute in-kernel, cast on store (halves store bytes).
    pe5 = jax.block_until_ready(positional_encoding(64, 48, dtype=jnp.bfloat16))
    assert pe5.shape == (64, 48) and pe5.dtype == jnp.bfloat16
    assert jnp.allclose(pe5.astype(jnp.float32), positional_encoding_ref(64, 48),
                        atol=2e-2, rtol=2e-2)

    print("KERNEL_OK")
</pallas_src>

<mosaic_0001>
module attributes {stable_mosaic.version = 11 : i64} {
  func.func @_pe_kernel(%arg0: i32, %arg1: memref<1x128xf32, #tpu.memory_space<vmem>>, %arg2: memref<1x128xf32, #tpu.memory_space<vmem>>, %arg3: memref<4x128xf32, #tpu.memory_space<vmem>>) attributes {dimension_semantics = [#tpu.dimension_semantics<parallel>], iteration_bounds = array<i64: 1>, scalar_prefetch = 0 : i64, scratch_operands = 0 : i64, tpu.core_type = #tpu.core_type<tc>, window_params = [{pipeline_mode = #tpu.pipeline_mode<synchronous>, transform_indices = @transform_0, window_bounds = array<i64: 1, 128>}, {pipeline_mode = #tpu.pipeline_mode<synchronous>, transform_indices = @transform_1, window_bounds = array<i64: 1, 128>}, {transform_indices = @transform_2, window_bounds = array<i64: 4, 128>}]} {
    %0 = tpu.iota {dimensions = array<i32: 0>} : vector<4x1xi32>
    %c4_i32 = arith.constant 4 : i32
    %1 = arith.muli %arg0, %c4_i32 : i32
    %2 = vector.broadcast %1 : i32 to vector<4x1xi32>
    %3 = arith.addi %0, %2 : vector<4x1xi32>
    %4 = arith.sitofp %3 : vector<4x1xi32> to vector<4x1xf32>
    %c0 = arith.constant 0 : index
    %c0_0 = arith.constant 0 : index
    %5 = vector.load %arg1[%c0, %c0_0] : memref<1x128xf32, #tpu.memory_space<vmem>>, vector<1x128xf32>
    %6 = vector.broadcast %4 : vector<4x1xf32> to vector<4x128xf32>
    %7 = vector.broadcast %5 : vector<1x128xf32> to vector<4x128xf32>
    %8 = arith.mulf %6, %7 : vector<4x128xf32>
    %c0_1 = arith.constant 0 : index
    %c0_2 = arith.constant 0 : index
    %9 = vector.load %arg2[%c0_1, %c0_2] : memref<1x128xf32, #tpu.memory_space<vmem>>, vector<1x128xf32>
    %10 = vector.broadcast %9 : vector<1x128xf32> to vector<4x128xf32>
    %11 = arith.addf %8, %10 : vector<4x128xf32>
    %12 = math.sin %11 : vector<4x128xf32>
    %c0_3 = arith.constant 0 : index
    %c0_4 = arith.constant 0 : index
    %13 = vector.load %arg3[%c0_3, %c0_4] : memref<4x128xf32, #tpu.memory_space<vmem>>, vector<4x128xf32>
    tpu.vector_store %arg3[%c0_3, %c0_4], %12 {strides = array<i32>} : memref<4x128xf32, #tpu.memory_space<vmem>>, vector<4x128xf32>,
    return
  }
  func.func @transform_0(%arg0: i32) -> (i32, i32) {
    %c0_i32 = arith.constant 0 : i32
    %c0_i32_0 = arith.constant 0 : i32
    %c0_i32_1 = arith.constant 0 : i32
    return %c0_i32, %c0_i32_0 : i32, i32
  }
  func.func @transform_1(%arg0: i32) -> (i32, i32) {
    %c0_i32 = arith.constant 0 : i32
    %c0_i32_0 = arith.constant 0 : i32
    %c0_i32_1 = arith.constant 0 : i32
    return %c0_i32, %c0_i32_0 : i32, i32
  }
  func.func @transform_2(%arg0: i32) -> (i32, i32) {
    %c0_i32 = arith.constant 0 : i32
    %c0_i32_0 = arith.constant 0 : i32
    return %arg0, %c0_i32 : i32, i32
  }
}

</mosaic_0001>

<llo_original>
// kernel: tpu_custom_call.1
$region0: #{tpu_custom_call.1}
  #allocation0 [shape = 'u32[]', space=smem, size = 0x4, offset = 0x4, fixed_abs, tag = 'smem constant byte address 0x4 - core index']
  #allocation1 [shape = 'u32[144,128]{1,0:T(1,128)}', space=vmem, size = 0x12000, scoped, tag = 'internal scratch']
  %s0 = inlined_call_operand.hbm [shape: f32[1,128], index: 0, kind: input, shape index: {}]
  %s1 = inlined_call_operand.vmem [shape: f32[1,128], index: 1, kind: input, shape index: {}]
  %s2 = inlined_call_operand.hbm [shape: f32[4,128], index: 2, kind: output, shape index: {}]
  %s3 = sld [smem:[#allocation0]]
  $region22: #{tpu_custom_call.1} parent=0
    _
  %s5 = ssub.s32 1, %s3
  %s6 = scalar_select 0, %s5, %s3
  $region1: #{tpu_custom_call.1} parent=0
    #allocation2 [shape = 'u8[512]{0}', space=vmem, size = 0x400, scoped, tag = 'input window, operand 0, single buffered']
    #allocation3 [shape = 's32[1]{0}', space=sflag, size = 0x4, scoped, tag = 'scoped memory for tpu_custom_call.1']
    #allocation4 [shape = 's32[1]{0}', space=sflag, size = 0x4, scoped, tag = 'scoped memory for tpu_custom_call.1']
    #allocation5 [shape = 'u8[2048]{0}', space=vmem, size = 0x800, scoped, tag = 'output window, operand 0, single buffered']
    %7 = vsyncpa [#allocation3], 0
    %8 = vsyncpa [#allocation4], 0
    // Predicated region
    $region2: #{tpu_custom_call.1} parent=1 // pred_check
      _
    $region3: #{tpu_custom_call.1} parent=1 // pred_check_branch
      %10 = sbr.rel (0) target = $region5
    $region4: #{tpu_custom_call.1} parent=1 // pred_region
      %s12 = ssub.s32 16, 16
      %13 = vsyncadd [#allocation3], %s12
      %s15 = sshll.u32 [#allocation2], 4
      %s16 = int_to_ptr.vmem [resolvable:$true] %s15
      %18 = dma.hbm_to_vmem [thread:$0]  %s0, 16, %s16, [#allocation3]
    $region5: #{tpu_custom_call.1} parent=1 // pred_fallthru
      _
    // Predicated region
    $region6: #{tpu_custom_call.1} parent=1 // pred_check
      _
    $region7: #{tpu_custom_call.1} parent=1 // pred_check_branch
      %20 = sbr.rel (0) target = $region9
    $region8: #{tpu_custom_call.1} parent=1 // pred_region
      _
    $region9: #{tpu_custom_call.1} parent=1 // pred_fallthru
      _
    // Predicated region
    $region10: #{tpu_custom_call.1} parent=1 // pred_check
      _
    $region11: #{tpu_custom_call.1} parent=1 // pred_check_branch
      %22 = sbr.rel (0) target = $region13
    $region12: #{tpu_custom_call.1} parent=1 // pred_region
      %23 = dma.done [#allocation3], 16
    $region13: #{tpu_custom_call.1} parent=1 // pred_fallthru
      _
    %v24 = vlaneseq
    %v25 = vshrl.u32 %v24, 7
    %s26 = smul.u32 0, 4
    %v27 = vstv %s26
    %v28 = vadd.s32 %v25, %v27
    %v29 = vcvt.s32.f32 %v28
    %v30 = vld [vmem:[#allocation2] sm:$0x1]
    %v32 = vlaneseq
    %v33 = vshrl.u32 %v32, 7
    %v34 = vsub.s32 0, %v33
    %v35 = vrot.slane %v30, %v34
    %v37 = vmul.f32 %v29, %v35
    %v38 = vld [vmem:[%s1] sm:$0x1]
    %v40 = vlaneseq
    %v41 = vshrl.u32 %v40, 7
    %v42 = vsub.s32 0, %v41
    %v43 = vrot.slane %v38, %v42
    %v45 = vadd.f32 %v37, %v43
    %v46 = vand.u32 2147483647, %v45
    %vm47 = vcmp.le.f32.partialorder %v46, 0.7853982
    %vm48 = vcmp.lt.s32.totalorder %v45, 0
    %v49 = vand.u32 %v45, 2139095040
    %v50 = vshrl.u32 %v49, 23
    %v51 = vsub.s32 %v50, 127
    %v52 = vand.u32 2147483647, %v45
    %v53 = vand.u32 %v52, 8388607
    %v54 = vor.u32 %v53, 8388608
    %v55 = vsub.s32 0, %v54
    %v56 = vadd.s32 %v51, 1
    %vm57 = vcmp.gt.s32.totalorder %v56, 0
    %v58 = vsel %vm57, %v56, 0
    %v59 = vshrl.u32 %v58, 5
    %v60 = vand.u32 %v58, 31
    %v61 = vsub.s32 32, %v60
    %v62 = vshrl.u32 683565275, %v61
    %v63 = vshll.u32 683565275, %v60
    %v64 = vshrl.u32 2475754826, %v61
    %v65 = vor.u32 %v63, %v64
    %v66 = vshll.u32 2475754826, %v60
    %v67 = vshrl.u32 2131351028, %v61
    %v68 = vor.u32 %v66, %v67
    %v69 = vshll.u32 2131351028, %v60
    %v70 = vshrl.u32 2102212464, %v61
    %v71 = vor.u32 %v69, %v70
    %v72 = vshll.u32 2102212464, %v60
    %v73 = vshrl.u32 920167782, %v61
    %v74 = vor.u32 %v72, %v73
    %v75 = vshll.u32 920167782, %v60
    %v76 = vshrl.u32 1326507024, %v61
    %v77 = vor.u32 %v75, %v76
    %vm78 = vcmp.lt.s32.totalorder %v59, 1
    %vm79 = vcmp.lt.s32.totalorder %v59, 2
    %vm80 = vcmp.lt.s32.totalorder %v59, 3
    %vm81 = vcmp.lt.s32.totalorder %v59, 4
    %v82 = vsel %vm78, %v62, %v65
    %v83 = vsel %vm81, %v71, 2102212464
    %v84 = vsel %vm80, %v68, %v83
    %v85 = vsel %vm79, %v82, %v84
    %v86 = vsel %vm78, %v65, %v68
    %v87 = vsel %vm81, %v74, 920167782
    %v88 = vsel %vm80, %v71, %v87
    %v89 = vsel %vm79, %v86, %v88
    %v90 = vsel %vm78, %v68, %v71
    %v91 = vsel %vm81, %v77, 1326507024
    %v92 = vsel %vm80, %v74, %v91
    %v93 = vsel %vm79, %v90, %v92
    %v94 = vshll.u32 %v54, 8
    %v95 = vmul.u32.u64.compose %v94, %v93
    %v96 = vextract.low.u32 %v95
    %v97 = vextract.high.u32 %v95
    %v98 = vmul.u32.u64.compose %v94, %v89
    %v99 = vextract.low.u32 %v98
    %v100 = vextract.high.u32 %v98
    %v101 = vmul.u32 %v94, %v85
    %v102 = vadd.s32 %v97, %v99
    %vm103 = vc.u32 %v97, %v99
    %v104 = vadd.s32 %v100, 1
    %v105 = vsel %vm103, %v104, %v100
    %v106 = vadd.s32 %v101, %v105
    %v107 = vadd.s32 %v106, 536870912
    %v108 = vshrl.u32 %v107, 30
    %v109 = vshll.u32 %v108, 30
    %v110 = vsub.s32 %v106, %v109
    %vm111 = vcmp.lt.s32.totalorder %v110, 0
    %v112 = vsub.s32 0, %v110
    %v113 = vsel %vm111, %v112, %v110
    %v114 = vclz %v113
    %v115 = vsub.s32 %v114, 2
    %vm116 = vcmp.gt.s32.totalorder 0, %v115
    %v117 = vsel %vm116, 0, %v115
    %v118 = vsub.s32 32, %v117
    %v119 = vshll.u32 %v110, %v117
    %v120 = vshrl.u32 %v102, %v118
    %v121 = vor.u32 %v119, %v120
    %v122 = vsub.s32 4294967266, %v117
    %v123 = vadd.s32 %v122, 127
    %v124 = vshll.u32 %v123, 23
    %v125 = vor.u32 4788187, %v124
    %v126 = vand.u32 2147483647, %v125
    %v128 = vcvt.s32.f32 %v121
    %v129 = vmul.f32 %v128, %v126
    %v130 = vxor.u32 %v129, 2147483648
    %v131 = vsel %vm48, %v130, %v129
    %v132 = vsub.s32 4, %v108
    %v133 = vsel %vm48, %v132, %v108
    %v134 = vsel %vm47, %v45, %v131
    %v135 = vsel %vm47, 0, %v133
    %v136 = vcosq.f32.pop %v134
    %v137 = vsinq.f32.pop %v134
    %vm138 = vweird.f32 %v45
    %v139 = vadd.s32 %v135, 3
    %v140 = vand.u32 %v139, 3
    %vm141 = vcmp.lt.s32.totalorder %v140, 2
    %vm142 = vcmp.eq.s32.totalorder %v140, 0
    %v143 = vxor.u32 %v137, 2147483648
    %v144 = vsel %vm142, %v136, %v143
    %vm145 = vcmp.eq.s32.totalorder %v140, 2
    %v146 = vxor.u32 %v136, 2147483648
    %v147 = vsel %vm145, %v146, %v137
    %v148 = vsel %vm141, %v144, %v147
    %v149 = vsel %vm138, nan, %v148
    %150 = vst [vmem:[#allocation5] sm:$0xf] %v149
    // Predicated region
    $region14: #{tpu_custom_call.1} parent=1 // pred_check
      _
    $region15: #{tpu_custom_call.1} parent=1 // pred_check_branch
      %152 = sbr.rel (0) target = $region17
    $region16: #{tpu_custom_call.1} parent=1 // pred_region
      %s154 = ssub.s32 64, 64
      %155 = vsyncadd [#allocation4], %s154
      %s157 = sshll.u32 [#allocation5], 4
      %s158 = int_to_ptr.vmem [resolvable:$true] %s157
      %160 = dma.vmem_to_hbm [thread:$0]  %s158, 64, %s2, [#allocation4]
    $region17: #{tpu_custom_call.1} parent=1 // pred_fallthru
      _
    // Predicated region
    $region18: #{tpu_custom_call.1} parent=1 // pred_check
      _
    $region19: #{tpu_custom_call.1} parent=1 // pred_check_branch
      %162 = sbr.rel (0) target = $region21
    $region20: #{tpu_custom_call.1} parent=1 // pred_region
      %163 = dma.done [#allocation4], 64
    $region21: #{tpu_custom_call.1} parent=1 // pred_fallthru
      _
    %164 = vsyncpa [#allocation3], 1
    %165 = vsyncpa [#allocation4], 1

</llo_original>
